<compile_context>
chip_gen: v5e
topology: v5e:2x2
jax: 0.10.0
libtpu: 0.0.40
codegen_flags: <defaults>
</compile_context>

<pallas_src>
import jax
import jax.numpy as jnp
from jax.experimental import pallas as pl
from jax.experimental.pallas import tpu as pltpu


# ---------------------------------------------------------------------------
# Parameter init — 1-D (1,) f32, matching nn.Parameter(torch.log(tensor([v]))).
# ---------------------------------------------------------------------------
def init_trainable_scalar(init_value: float) -> jax.Array:
    return jnp.log(jnp.full((1,), init_value, dtype=jnp.float32))


# ---------------------------------------------------------------------------
# Recommended forward: pure JAX. XLA constant-folds / fuses the scalar into
# whatever consumes it — no custom-call launch, no fusion barrier, and it is
# differentiable (the parameter is trainable).
# ---------------------------------------------------------------------------
def trainable_scalar_forward(scalar_param: jax.Array) -> jax.Array:
    """forward(): return self.scalar[0]  ->  0-d float32."""
    return scalar_param.reshape(())


# ---------------------------------------------------------------------------
# Standalone Pallas kernel (contract only — do NOT use on the hot path).
# SMEM in / SMEM out, 1-D scalar, no aliasing of the persistent param buffer.
# ---------------------------------------------------------------------------
def _scalar_kernel(p_ref, o_ref):
    # forward() is literally one scalar read + one scalar write.
    o_ref[0] = p_ref[0]


def trainable_scalar_forward_pallas(scalar_param: jax.Array) -> jax.Array:
    """scalar_param: (1,) float32. Returns 0-d float32 (== scalar[0])."""
    out = pl.pallas_call(
        _scalar_kernel,
        out_shape=jax.ShapeDtypeStruct((1,), jnp.float32),
        in_specs=[pl.BlockSpec(memory_space=pltpu.SMEM)],
        out_specs=pl.BlockSpec(memory_space=pltpu.SMEM),
    )(scalar_param)
    return out[0]


# ---------------------------------------------------------------------------
# Fuse-into-consumer pattern (demo): the (1,) param rides the consumer
# kernel's SMEM / scalar slots; the multiply is free filler in the VALU slot
# of a kernel that already moves x through VMEM. The consumer is tiled with a
# grid (double-buffered DMA/compute overlap, no whole-array VMEM cliff),
# lane-dense last dim, and parallel grid semantics for v7x's 2 TensorCores.
# ---------------------------------------------------------------------------
def _scale_consumer_kernel(p_ref, x_ref, o_ref):
    o_ref[...] = x_ref[...] * p_ref[0]


def scale_by_trainable_scalar(scalar_param: jax.Array, x: jax.Array,
                              *, tile_rows: int = 128) -> jax.Array:
    """Demo consumer: y = scalar * x, x shape (M, N) with N a multiple of 128.

    In production the multiply should live in the epilogue of the kernel that
    already holds x (attention / matmul), not in a dedicated pass — a
    standalone scale kernel costs a full HBM read+write round trip.
    """
    M, N = x.shape
    assert N % 128 == 0, "keep the output lane-dense (last dim multiple of 128)"
    assert M % tile_rows == 0
    grid = (M // tile_rows,)
    return pl.pallas_call(
        _scale_consumer_kernel,
        out_shape=jax.ShapeDtypeStruct(x.shape, x.dtype),
        grid=grid,
        in_specs=[
            pl.BlockSpec(memory_space=pltpu.SMEM),                   # (1,) scalar param
            pl.BlockSpec((tile_rows, N), lambda i: (i, 0)),          # tiled x in VMEM
        ],
        out_specs=pl.BlockSpec((tile_rows, N), lambda i: (i, 0)),    # lane-dense output
        compiler_params=pltpu.CompilerParams(
            dimension_semantics=("parallel",),                       # shards across TCs on v7x
        ),
    )(scalar_param, x)


if __name__ == "__main__":
    key = jax.random.PRNGKey(0)
    k_init, k_x = jax.random.split(key)

    # Deterministic init_value derived from PRNGKey(0); the module itself has
    # no tensor inputs — only its (1,) parameter.
    init_value = float(jax.random.uniform(k_init, (), minval=0.5, maxval=2.0))
    scalar_param = init_trainable_scalar(init_value)          # (1,) f32 == log(init_value)

    # Reference semantics of forward(): self.scalar[0]
    ref = scalar_param[0]

    # 1) Recommended forward (pure JAX; fuses into consumers for free).
    out = jax.block_until_ready(trainable_scalar_forward(scalar_param))
    assert out.shape == () and out.dtype == jnp.float32
    assert jnp.allclose(out, ref), (out, ref)

    # 2) Standalone Pallas kernel (SMEM in/out, no aliasing of the param).
    out_pl = jax.block_until_ready(trainable_scalar_forward_pallas(scalar_param))
    assert out_pl.shape == () and out_pl.dtype == jnp.float32
    assert jnp.allclose(out_pl, ref), (out_pl, ref)

    # 3) Fuse-into-consumer demo: tiled, lane-dense, parallel grid.
    x = jax.random.normal(k_x, (256, 256), dtype=jnp.float32)  # small, lane-dense
    y = jax.block_until_ready(scale_by_trainable_scalar(scalar_param, x, tile_rows=128))
    assert y.shape == x.shape and y.dtype == x.dtype
    assert jnp.allclose(y, x * ref, rtol=1e-6, atol=1e-6)

    print("KERNEL_OK")
</pallas_src>

<mosaic_0001>
module attributes {stable_mosaic.version = 11 : i64} {
  func.func @_scalar_kernel(%arg0: memref<1xf32, #tpu.memory_space<smem>>, %arg1: memref<1xf32, #tpu.memory_space<smem>>) attributes {dimension_semantics = [], scalar_prefetch = 0 : i64, scratch_operands = 0 : i64, tpu.core_type = #tpu.core_type<tc>} {
    %c0 = arith.constant 0 : index
    %0 = memref.load %arg0[%c0] : memref<1xf32, #tpu.memory_space<smem>>
    %c0_0 = arith.constant 0 : index
    %1 = memref.load %arg1[%c0_0] : memref<1xf32, #tpu.memory_space<smem>>
    memref.store %0, %arg1[%c0_0] : memref<1xf32, #tpu.memory_space<smem>>
    return
  }
}

</mosaic_0001>

<llo_original>
// kernel: tpu_custom_call.1
$region0: #{tpu_custom_call.1}
  #allocation0 [shape = 'u32[]', space=smem, size = 0x4, offset = 0x4, fixed_abs, tag = 'smem constant byte address 0x4 - core index']
  #allocation1 [shape = 'u32[72,128]{1,0:T(1,128)}', space=vmem, size = 0x9000, scoped, tag = 'internal scratch']
  #allocation2 [shape = 'f32[1]{0:T(128)S(6)}', space=smem, size = 0x200, scoped, tag = 'scoped memory for tpu_custom_call.1']
  %s0 = inlined_call_operand.<no memory space> [shape: f32[1], index: 0, kind: input, shape index: {}]
  %s1 = inlined_call_operand.hbm [shape: f32[1], index: 1, kind: output, shape index: {}]
  %s2 = sld [smem:[#allocation0]]
  $region14: #{tpu_custom_call.1} parent=0
    _
  %s4 = ssub.s32 1, %s2
  %s5 = scalar_select 0, %s4, %s2
  %6 = sst [smem:[#allocation2]] %s0
  $region1: #{tpu_custom_call.1} parent=0
    #allocation3 [shape = 'u8[512]{0}', space=smem, size = 0x200, scoped, tag = 'output window, operand 0, single buffered']
    #allocation4 [shape = 's32[1]{0}', space=sflag, size = 0x4, scoped, tag = 'scoped memory for tpu_custom_call.1']
    %7 = vsyncpa [#allocation4], 0
    // Predicated region
    $region2: #{tpu_custom_call.1} parent=1 // pred_check
      _
    $region3: #{tpu_custom_call.1} parent=1 // pred_check_branch
      %9 = sbr.rel (0) target = $region5
    $region4: #{tpu_custom_call.1} parent=1 // pred_region
      _
    $region5: #{tpu_custom_call.1} parent=1 // pred_fallthru
      _
    %s10 = sld [smem:[#allocation2]]
    %s11 = scalar_lea.smem [#allocation3], 0
    %12 = sst [smem:[%s11]] %s10
    // Predicated region
    $region6: #{tpu_custom_call.1} parent=1 // pred_check
      _
    $region7: #{tpu_custom_call.1} parent=1 // pred_check_branch
      %14 = sbr.rel (0) target = $region9
    $region8: #{tpu_custom_call.1} parent=1 // pred_region
      %16 = vsyncadd [#allocation4], 0
      %s18 = sshll.u32 %s1, 4
      %s19 = int_to_ptr.hbm [resolvable:$true] %s18
      %21 = dma.smem_to_hbm [#allocation3], 16, %s19, [#allocation4]
    $region9: #{tpu_custom_call.1} parent=1 // pred_fallthru
      _
    // Predicated region
    $region10: #{tpu_custom_call.1} parent=1 // pred_check
      _
    $region11: #{tpu_custom_call.1} parent=1 // pred_check_branch
      %23 = sbr.rel (0) target = $region13
    $region12: #{tpu_custom_call.1} parent=1 // pred_region
      %25 = dma.done [#allocation4], 16
    $region13: #{tpu_custom_call.1} parent=1 // pred_fallthru
      _
    %26 = sfence
    %27 = vsyncpa [#allocation4], 1

</llo_original>
